<compile_context>
chip_gen: v7x
topology: tpu7x:2x2x1
jax: 0.10.0
libtpu: 0.0.40
codegen_flags: <defaults>
</compile_context>

<pallas_src>
import functools
import math

import jax
import jax.numpy as jnp
from jax import lax
from jax.experimental import pallas as pl
from jax.experimental.pallas import tpu as pltpu


def _margin(w: int) -> int:
    """Zero-margin width on each side of the flat activation (lane aligned, >= W+1)."""
    return ((w + 1 + 127) // 128) * 128


def _conv3x3_relu_flat(ext_ref, col_ref, w_r, b, mask_l, mask_r, *, H, W):
    """3x3 'same' conv + ReLU on a flat (row-major y*W+x) activation.

    ext_ref : VMEM (C, PAD + H*W + PAD); interior [PAD, PAD+H*W) holds the
              activation, both margins are zero (vertical zero padding).
    col_ref : VMEM (9*C, H*W) im2col scratch.
    w_r     : (Cout, 9*C) value, rows ordered (dy, dx, ci).
    b       : (Cout, 1) value.
    mask_l  : (1, H*W) f32, 0 where column == 0     (left neighbour out of image)
    mask_r  : (1, H*W) f32, 0 where column == W - 1 (right neighbour out of image)
    Returns (Cout, H*W) f32.
    """
    HW = H * W
    C = ext_ref.shape[0]
    PAD = _margin(W)
    for t in range(9):
        dy, dx = t // 3, t % 3
        off = (dy - 1) * W + (dx - 1)
        # Shifted tap: ext[PAD + off + p] == activation[p + off]; vertical
        # out-of-bounds reads land in the zero margins.
        tap = ext_ref[:, PAD + off:PAD + off + HW]              # (C, HW)
        if dx == 0:
            tap = tap * mask_l     # x-1 wrapped to previous row -> zero it
        elif dx == 2:
            tap = tap * mask_r     # x+1 wrapped to next row -> zero it
        col_ref[t * C:(t + 1) * C, :] = tap
    # One MXU matmul per conv (K = 9*C) instead of 9 tiny K=C dots.
    out = jnp.dot(w_r, col_ref[...], preferred_element_type=jnp.float32)
    return jnp.maximum(out + b, 0.0)


def _block_kernel(x_ref, ml_ref, mr_ref, w1_ref, b1_ref, w2_ref, b2_ref,
                  o_ref, ext, col, *, H, W):
    # x_ref : (1, Cin, H*W)   one NCHW image with H*W flattened on lanes
    # o_ref : (1, Cout, H*W)
    # ext   : VMEM (Cin, PAD + H*W + PAD)   (reused for both stages, Cin==Cmid)
    # col   : VMEM (9*Cin, H*W)
    HW = H * W
    PAD = _margin(W)
    C = ext.shape[0]
    mask_l = ml_ref[...]
    mask_r = mr_ref[...]

    # Zero margins = zero padding (written every grid step -> megacore safe).
    zeros_m = jnp.zeros((C, PAD), jnp.float32)
    ext[:, :PAD] = zeros_m
    ext[:, PAD + HW:PAD + HW + PAD] = zeros_m

    # ---- stage 1: Conv2d(dim, dim, 3, padding=1) + ReLU ---------------------
    ext[:, PAD:PAD + HW] = x_ref[0]
    h = _conv3x3_relu_flat(ext, col, w1_ref[...], b1_ref[...],
                           mask_l, mask_r, H=H, W=W)            # (Cmid, HW)

    # ---- stage 2: Conv2d(dim, dim_out, 3, padding=1) + ReLU -----------------
    # The intermediate `h` stays on-chip (fused) -- no HBM round-trip.
    ext[:, PAD:PAD + HW] = h
    y = _conv3x3_relu_flat(ext, col, w2_ref[...], b2_ref[...],
                           mask_l, mask_r, H=H, W=W)            # (Cout, HW)

    # Lane-dense final store (H*W lanes wide).
    o_ref[0] = y.astype(o_ref.dtype)


@jax.jit
def block_forward(x, w1, b1, w2, b2):
    """Block.forward: x (N, dim, H, W) NCHW -> (N, dim_out, H, W) NCHW."""
    N, Cin, H, W = x.shape
    Cmid, Cout = w1.shape[0], w2.shape[0]
    assert w1.shape == (Cmid, Cin, 3, 3) and w2.shape == (Cout, Cmid, 3, 3)
    assert Cin == Cmid, "Block is Conv(dim, dim) -> Conv(dim, dim_out)"
    HW = H * W
    PAD = _margin(W)

    # NCHW -> (N, C, H*W): metadata-only reshape (no transpose, no HBM pass).
    xf = x.reshape(N, Cin, HW)

    # Weights -> (Cout, 9*Cin) with rows ordered (dy, dx, ci) to match im2col.
    w1_r = jnp.transpose(w1, (0, 2, 3, 1)).reshape(Cmid, 9 * Cin)
    w2_r = jnp.transpose(w2, (0, 2, 3, 1)).reshape(Cout, 9 * Cmid)
    b1c = b1.reshape(Cmid, 1)
    b2c = b2.reshape(Cout, 1)

    # Horizontal boundary masks (vertical boundaries handled by zero margins).
    colx = jnp.tile(jnp.arange(W, dtype=jnp.int32), (H,)).reshape(1, HW)
    mask_l = (colx >= 1).astype(jnp.float32)
    mask_r = (colx <= W - 2).astype(jnp.float32)

    kernel = functools.partial(_block_kernel, H=H, W=W)
    # TODO(synk): for large H*W add a row-tiled grid axis (2-row halo across the
    # fused conv pair) so the per-step working set stays inside v7x's 64 MiB VMEM
    # and both TensorCores get several parallel steps.
    out_flat = pl.pallas_call(
        kernel,
        out_shape=jax.ShapeDtypeStruct((N, Cout, HW), jnp.float32),
        grid=(N,),
        in_specs=[
            pl.BlockSpec((1, Cin, HW), lambda n: (n, 0, 0)),
            pl.BlockSpec((1, HW), lambda n: (0, 0)),
            pl.BlockSpec((1, HW), lambda n: (0, 0)),
            pl.BlockSpec((Cmid, 9 * Cin), lambda n: (0, 0)),
            pl.BlockSpec((Cmid, 1), lambda n: (0, 0)),
            pl.BlockSpec((Cout, 9 * Cmid), lambda n: (0, 0)),
            pl.BlockSpec((Cout, 1), lambda n: (0, 0)),
        ],
        out_specs=pl.BlockSpec((1, Cout, HW), lambda n: (n, 0, 0)),
        scratch_shapes=[
            pltpu.VMEM((Cin, PAD + HW + PAD), jnp.float32),
            pltpu.VMEM((9 * Cin, HW), jnp.float32),
        ],
        compiler_params=pltpu.CompilerParams(
            dimension_semantics=("parallel",),
        ),
    )(xf, mask_l, mask_r, w1_r, b1c, w2_r, b2c)

    # (N, Cout, H*W) -> NCHW: metadata-only reshape.
    return out_flat.reshape(N, Cout, H, W)


def block_forward_ref(x, w1, b1, w2, b2):
    """Pure-JAX reference (lax.conv on NCHW/OIHW) for correctness checking."""
    dn = ("NCHW", "OIHW", "NCHW")
    h = lax.conv_general_dilated(x, w1, (1, 1), "SAME", dimension_numbers=dn)
    h = jnp.maximum(h + b1[None, :, None, None], 0.0)
    y = lax.conv_general_dilated(h, w2, (1, 1), "SAME", dimension_numbers=dn)
    y = jnp.maximum(y + b2[None, :, None, None], 0.0)
    return y


def init_conv_params(key, cin, cout):
    """Deterministic init mimicking PyTorch Conv2d default (uniform +-1/sqrt(fan_in))."""
    kw, kb = jax.random.split(key)
    bound = 1.0 / math.sqrt(cin * 9)
    w = jax.random.uniform(kw, (cout, cin, 3, 3), jnp.float32, -bound, bound)  # OIHW
    b = jax.random.uniform(kb, (cout,), jnp.float32, -bound, bound)
    return w, b


if __name__ == "__main__":
    # Small shapes consistent with Block(dim=4, dim_out=8)
    N, dim, dim_out, H, W = 2, 4, 8, 16, 16

    key = jax.random.PRNGKey(0)
    kx, k1, k2 = jax.random.split(key, 3)

    x = jax.random.normal(kx, (N, dim, H, W), dtype=jnp.float32)   # NCHW, like torch
    w1, b1 = init_conv_params(k1, dim, dim)
    w2, b2 = init_conv_params(k2, dim, dim_out)

    out = jax.block_until_ready(block_forward(x, w1, b1, w2, b2))

    ref = block_forward_ref(x, w1, b1, w2, b2)
    assert out.shape == (N, dim_out, H, W)
    assert jnp.allclose(out, ref, atol=2e-4, rtol=2e-4), "mismatch vs JAX reference"

    print("KERNEL_OK")
</pallas_src>

<mosaic_0001>
module attributes {stable_mosaic.version = 11 : i64} {
  func.func @_block_kernel(%arg0: i32, %arg1: memref<1x4x256xf32, #tpu.memory_space<vmem>>, %arg2: memref<1x256xf32, #tpu.memory_space<vmem>>, %arg3: memref<1x256xf32, #tpu.memory_space<vmem>>, %arg4: memref<4x36xf32, #tpu.memory_space<vmem>>, %arg5: memref<4x1xf32, #tpu.memory_space<vmem>>, %arg6: memref<8x36xf32, #tpu.memory_space<vmem>>, %arg7: memref<8x1xf32, #tpu.memory_space<vmem>>, %arg8: memref<1x8x256xf32, #tpu.memory_space<vmem>>, %arg9: memref<4x512xf32, #tpu.memory_space<vmem>>, %arg10: memref<36x256xf32, #tpu.memory_space<vmem>>) attributes {dimension_semantics = [#tpu.dimension_semantics<parallel>], iteration_bounds = array<i64: 2>, scalar_prefetch = 0 : i64, scratch_operands = 2 : i64, tpu.core_type = #tpu.core_type<tc>, window_params = [{transform_indices = @transform_0, window_bounds = array<i64: 1, 4, 256>}, {pipeline_mode = #tpu.pipeline_mode<synchronous>, transform_indices = @transform_1, window_bounds = array<i64: 1, 256>}, {pipeline_mode = #tpu.pipeline_mode<synchronous>, transform_indices = @transform_2, window_bounds = array<i64: 1, 256>}, {pipeline_mode = #tpu.pipeline_mode<synchronous>, transform_indices = @transform_3, window_bounds = array<i64: 4, 36>}, {pipeline_mode = #tpu.pipeline_mode<synchronous>, transform_indices = @transform_4, window_bounds = array<i64: 4, 1>}, {pipeline_mode = #tpu.pipeline_mode<synchronous>, transform_indices = @transform_5, window_bounds = array<i64: 8, 36>}, {pipeline_mode = #tpu.pipeline_mode<synchronous>, transform_indices = @transform_6, window_bounds = array<i64: 8, 1>}, {transform_indices = @transform_7, window_bounds = array<i64: 1, 8, 256>}]} {
    %c0 = arith.constant 0 : index
    %c0_0 = arith.constant 0 : index
    %0 = vector.load %arg2[%c0, %c0_0] : memref<1x256xf32, #tpu.memory_space<vmem>>, vector<1x256xf32>
    %c0_1 = arith.constant 0 : index
    %c0_2 = arith.constant 0 : index
    %1 = vector.load %arg3[%c0_1, %c0_2] : memref<1x256xf32, #tpu.memory_space<vmem>>, vector<1x256xf32>
    %cst = arith.constant 0.000000e+00 : f32
    %2 = vector.broadcast %cst : f32 to vector<4x128xf32>
    %c0_3 = arith.constant 0 : index
    %c0_4 = arith.constant 0 : index
    %3 = vector.load %arg9[%c0_3, %c0_4] : memref<4x512xf32, #tpu.memory_space<vmem>>, vector<4x128xf32>
    tpu.vector_store %arg9[%c0_3, %c0_4], %2 {strides = array<i32>} : memref<4x512xf32, #tpu.memory_space<vmem>>, vector<4x128xf32>,
    %c0_5 = arith.constant 0 : index
    %c384 = arith.constant 384 : index
    %4 = vector.load %arg9[%c0_5, %c384] : memref<4x512xf32, #tpu.memory_space<vmem>>, vector<4x128xf32>
    tpu.vector_store %arg9[%c0_5, %c384], %2 {strides = array<i32>} : memref<4x512xf32, #tpu.memory_space<vmem>>, vector<4x128xf32>,
    %c0_6 = arith.constant 0 : index
    %c0_7 = arith.constant 0 : index
    %c0_8 = arith.constant 0 : index
    %5 = vector.load %arg1[%c0_6, %c0_7, %c0_8] : memref<1x4x256xf32, #tpu.memory_space<vmem>>, vector<1x4x256xf32>
    %6 = vector.shape_cast %5 : vector<1x4x256xf32> to vector<4x256xf32>
    %c0_9 = arith.constant 0 : index
    %c128 = arith.constant 128 : index
    %7 = vector.load %arg9[%c0_9, %c128] : memref<4x512xf32, #tpu.memory_space<vmem>>, vector<4x256xf32>
    tpu.vector_store %arg9[%c0_9, %c128], %6 {strides = array<i32>} : memref<4x512xf32, #tpu.memory_space<vmem>>, vector<4x256xf32>,
    %c0_10 = arith.constant 0 : index
    %c0_11 = arith.constant 0 : index
    %8 = vector.load %arg4[%c0_10, %c0_11] : memref<4x36xf32, #tpu.memory_space<vmem>>, vector<4x36xf32>
    %c0_12 = arith.constant 0 : index
    %c0_13 = arith.constant 0 : index
    %9 = vector.load %arg5[%c0_12, %c0_13] : memref<4x1xf32, #tpu.memory_space<vmem>>, vector<4x1xf32>
    %c0_14 = arith.constant 0 : index
    %c111 = arith.constant 111 : index
    %10 = vector.load %arg9[%c0_14, %c111] : memref<4x512xf32, #tpu.memory_space<vmem>>, vector<4x256xf32>
    %11 = vector.broadcast %0 : vector<1x256xf32> to vector<4x256xf32>
    %12 = arith.mulf %10, %11 : vector<4x256xf32>
    %c0_15 = arith.constant 0 : index
    %c0_16 = arith.constant 0 : index
    %13 = vector.load %arg10[%c0_15, %c0_16] : memref<36x256xf32, #tpu.memory_space<vmem>>, vector<4x256xf32>
    tpu.vector_store %arg10[%c0_15, %c0_16], %12 {strides = array<i32>} : memref<36x256xf32, #tpu.memory_space<vmem>>, vector<4x256xf32>,
    %c0_17 = arith.constant 0 : index
    %c112 = arith.constant 112 : index
    %14 = vector.load %arg9[%c0_17, %c112] : memref<4x512xf32, #tpu.memory_space<vmem>>, vector<4x256xf32>
    %c4 = arith.constant 4 : index
    %c0_18 = arith.constant 0 : index
    %15 = vector.load %arg10[%c4, %c0_18] : memref<36x256xf32, #tpu.memory_space<vmem>>, vector<4x256xf32>
    tpu.vector_store %arg10[%c4, %c0_18], %14 {strides = array<i32>} : memref<36x256xf32, #tpu.memory_space<vmem>>, vector<4x256xf32>,
    %c0_19 = arith.constant 0 : index
    %c113 = arith.constant 113 : index
    %16 = vector.load %arg9[%c0_19, %c113] : memref<4x512xf32, #tpu.memory_space<vmem>>, vector<4x256xf32>
    %17 = vector.broadcast %1 : vector<1x256xf32> to vector<4x256xf32>
    %18 = arith.mulf %16, %17 : vector<4x256xf32>
    %c8 = arith.constant 8 : index
    %c0_20 = arith.constant 0 : index
    %19 = vector.load %arg10[%c8, %c0_20] : memref<36x256xf32, #tpu.memory_space<vmem>>, vector<4x256xf32>
    tpu.vector_store %arg10[%c8, %c0_20], %18 {strides = array<i32>} : memref<36x256xf32, #tpu.memory_space<vmem>>, vector<4x256xf32>,
    %c0_21 = arith.constant 0 : index
    %c127 = arith.constant 127 : index
    %20 = vector.load %arg9[%c0_21, %c127] : memref<4x512xf32, #tpu.memory_space<vmem>>, vector<4x256xf32>
    %21 = vector.broadcast %0 : vector<1x256xf32> to vector<4x256xf32>
    %22 = arith.mulf %20, %21 : vector<4x256xf32>
    %c12 = arith.constant 12 : index
    %c0_22 = arith.constant 0 : index
    %23 = vector.load %arg10[%c12, %c0_22] : memref<36x256xf32, #tpu.memory_space<vmem>>, vector<4x256xf32>
    tpu.vector_store %arg10[%c12, %c0_22], %22 {strides = array<i32>} : memref<36x256xf32, #tpu.memory_space<vmem>>, vector<4x256xf32>,
    %c0_23 = arith.constant 0 : index
    %c128_24 = arith.constant 128 : index
    %24 = vector.load %arg9[%c0_23, %c128_24] : memref<4x512xf32, #tpu.memory_space<vmem>>, vector<4x256xf32>
    %c16 = arith.constant 16 : index
    %c0_25 = arith.constant 0 : index
    %25 = vector.load %arg10[%c16, %c0_25] : memref<36x256xf32, #tpu.memory_space<vmem>>, vector<4x256xf32>
    tpu.vector_store %arg10[%c16, %c0_25], %24 {strides = array<i32>} : memref<36x256xf32, #tpu.memory_space<vmem>>, vector<4x256xf32>,
    %c0_26 = arith.constant 0 : index
    %c129 = arith.constant 129 : index
    %26 = vector.load %arg9[%c0_26, %c129] : memref<4x512xf32, #tpu.memory_space<vmem>>, vector<4x256xf32>
    %27 = vector.broadcast %1 : vector<1x256xf32> to vector<4x256xf32>
    %28 = arith.mulf %26, %27 : vector<4x256xf32>
    %c20 = arith.constant 20 : index
    %c0_27 = arith.constant 0 : index
    %29 = vector.load %arg10[%c20, %c0_27] : memref<36x256xf32, #tpu.memory_space<vmem>>, vector<4x256xf32>
    tpu.vector_store %arg10[%c20, %c0_27], %28 {strides = array<i32>} : memref<36x256xf32, #tpu.memory_space<vmem>>, vector<4x256xf32>,
    %c0_28 = arith.constant 0 : index
    %c143 = arith.constant 143 : index
    %30 = vector.load %arg9[%c0_28, %c143] : memref<4x512xf32, #tpu.memory_space<vmem>>, vector<4x256xf32>
    %31 = vector.broadcast %0 : vector<1x256xf32> to vector<4x256xf32>
    %32 = arith.mulf %30, %31 : vector<4x256xf32>
    %c24 = arith.constant 24 : index
    %c0_29 = arith.constant 0 : index
    %33 = vector.load %arg10[%c24, %c0_29] : memref<36x256xf32, #tpu.memory_space<vmem>>, vector<4x256xf32>
    tpu.vector_store %arg10[%c24, %c0_29], %32 {strides = array<i32>} : memref<36x256xf32, #tpu.memory_space<vmem>>, vector<4x256xf32>,
    %c0_30 = arith.constant 0 : index
    %c144 = arith.constant 144 : index
    %34 = vector.load %arg9[%c0_30, %c144] : memref<4x512xf32, #tpu.memory_space<vmem>>, vector<4x256xf32>
    %c28 = arith.constant 28 : index
    %c0_31 = arith.constant 0 : index
    %35 = vector.load %arg10[%c28, %c0_31] : memref<36x256xf32, #tpu.memory_space<vmem>>, vector<4x256xf32>
    tpu.vector_store %arg10[%c28, %c0_31], %34 {strides = array<i32>} : memref<36x256xf32, #tpu.memory_space<vmem>>, vector<4x256xf32>,
    %c0_32 = arith.constant 0 : index
    %c145 = arith.constant 145 : index
    %36 = vector.load %arg9[%c0_32, %c145] : memref<4x512xf32, #tpu.memory_space<vmem>>, vector<4x256xf32>
    %37 = vector.broadcast %1 : vector<1x256xf32> to vector<4x256xf32>
    %38 = arith.mulf %36, %37 : vector<4x256xf32>
    %c32 = arith.constant 32 : index
    %c0_33 = arith.constant 0 : index
    %39 = vector.load %arg10[%c32, %c0_33] : memref<36x256xf32, #tpu.memory_space<vmem>>, vector<4x256xf32>
    tpu.vector_store %arg10[%c32, %c0_33], %38 {strides = array<i32>} : memref<36x256xf32, #tpu.memory_space<vmem>>, vector<4x256xf32>,
    %c0_34 = arith.constant 0 : index
    %c0_35 = arith.constant 0 : index
    %40 = vector.load %arg10[%c0_34, %c0_35] : memref<36x256xf32, #tpu.memory_space<vmem>>, vector<36x256xf32>
    %cst_36 = arith.constant dense<0.000000e+00> : vector<4x256xf32>
    %41 = tpu.matmul %8, %40, %cst_36 {dimension_numbers = #tpu.dot_dimension_numbers<[1], [0], [0], [1], [0, 0, 1, 1], [], []>} : vector<4x36xf32>, vector<36x256xf32>, vector<4x256xf32> -> vector<4x256xf32>
    %42 = vector.broadcast %9 : vector<4x1xf32> to vector<4x256xf32>
    %43 = arith.addf %41, %42 : vector<4x256xf32>
    %cst_37 = arith.constant 0.000000e+00 : f32
    %44 = vector.broadcast %cst_37 : f32 to vector<4x256xf32>
    %45 = arith.maximumf %43, %44 : vector<4x256xf32>
    %c0_38 = arith.constant 0 : index
    %c128_39 = arith.constant 128 : index
    %46 = vector.load %arg9[%c0_38, %c128_39] : memref<4x512xf32, #tpu.memory_space<vmem>>, vector<4x256xf32>
    tpu.vector_store %arg9[%c0_38, %c128_39], %45 {strides = array<i32>} : memref<4x512xf32, #tpu.memory_space<vmem>>, vector<4x256xf32>,
    %c0_40 = arith.constant 0 : index
    %c0_41 = arith.constant 0 : index
    %47 = vector.load %arg6[%c0_40, %c0_41] : memref<8x36xf32, #tpu.memory_space<vmem>>, vector<8x36xf32>
    %c0_42 = arith.constant 0 : index
    %c0_43 = arith.constant 0 : index
    %48 = vector.load %arg7[%c0_42, %c0_43] : memref<8x1xf32, #tpu.memory_space<vmem>>, vector<8x1xf32>
    %c0_44 = arith.constant 0 : index
    %c111_45 = arith.constant 111 : index
    %49 = vector.load %arg9[%c0_44, %c111_45] : memref<4x512xf32, #tpu.memory_space<vmem>>, vector<4x256xf32>
    %50 = vector.broadcast %0 : vector<1x256xf32> to vector<4x256xf32>
    %51 = arith.mulf %49, %50 : vector<4x256xf32>
    %c0_46 = arith.constant 0 : index
    %c0_47 = arith.constant 0 : index
    %52 = vector.load %arg10[%c0_46, %c0_47] : memref<36x256xf32, #tpu.memory_space<vmem>>, vector<4x256xf32>
    tpu.vector_store %arg10[%c0_46, %c0_47], %51 {strides = array<i32>} : memref<36x256xf32, #tpu.memory_space<vmem>>, vector<4x256xf32>,
    %c0_48 = arith.constant 0 : index
    %c112_49 = arith.constant 112 : index
    %53 = vector.load %arg9[%c0_48, %c112_49] : memref<4x512xf32, #tpu.memory_space<vmem>>, vector<4x256xf32>
    %c4_50 = arith.constant 4 : index
    %c0_51 = arith.constant 0 : index
    %54 = vector.load %arg10[%c4_50, %c0_51] : memref<36x256xf32, #tpu.memory_space<vmem>>, vector<4x256xf32>
    tpu.vector_store %arg10[%c4_50, %c0_51], %53 {strides = array<i32>} : memref<36x256xf32, #tpu.memory_space<vmem>>, vector<4x256xf32>,
    %c0_52 = arith.constant 0 : index
    %c113_53 = arith.constant 113 : index
    %55 = vector.load %arg9[%c0_52, %c113_53] : memref<4x512xf32, #tpu.memory_space<vmem>>, vector<4x256xf32>
    %56 = vector.broadcast %1 : vector<1x256xf32> to vector<4x256xf32>
    %57 = arith.mulf %55, %56 : vector<4x256xf32>
    %c8_54 = arith.constant 8 : index
    %c0_55 = arith.constant 0 : index
    %58 = vector.load %arg10[%c8_54, %c0_55] : memref<36x256xf32, #tpu.memory_space<vmem>>, vector<4x256xf32>
    tpu.vector_store %arg10[%c8_54, %c0_55], %57 {strides = array<i32>} : memref<36x256xf32, #tpu.memory_space<vmem>>, vector<4x256xf32>,
    %c0_56 = arith.constant 0 : index
    %c127_57 = arith.constant 127 : index
    %59 = vector.load %arg9[%c0_56, %c127_57] : memref<4x512xf32, #tpu.memory_space<vmem>>, vector<4x256xf32>
    %60 = vector.broadcast %0 : vector<1x256xf32> to vector<4x256xf32>
    %61 = arith.mulf %59, %60 : vector<4x256xf32>
    %c12_58 = arith.constant 12 : index
    %c0_59 = arith.constant 0 : index
    %62 = vector.load %arg10[%c12_58, %c0_59] : memref<36x256xf32, #tpu.memory_space<vmem>>, vector<4x256xf32>
    tpu.vector_store %arg10[%c12_58, %c0_59], %61 {strides = array<i32>} : memref<36x256xf32, #tpu.memory_space<vmem>>, vector<4x256xf32>,
    %c0_60 = arith.constant 0 : index
    %c128_61 = arith.constant 128 : index
    %63 = vector.load %arg9[%c0_60, %c128_61] : memref<4x512xf32, #tpu.memory_space<vmem>>, vector<4x256xf32>
    %c16_62 = arith.constant 16 : index
    %c0_63 = arith.constant 0 : index
    %64 = vector.load %arg10[%c16_62, %c0_63] : memref<36x256xf32, #tpu.memory_space<vmem>>, vector<4x256xf32>
    tpu.vector_store %arg10[%c16_62, %c0_63], %63 {strides = array<i32>} : memref<36x256xf32, #tpu.memory_space<vmem>>, vector<4x256xf32>,
    %c0_64 = arith.constant 0 : index
    %c129_65 = arith.constant 129 : index
    %65 = vector.load %arg9[%c0_64, %c129_65] : memref<4x512xf32, #tpu.memory_space<vmem>>, vector<4x256xf32>
    %66 = vector.broadcast %1 : vector<1x256xf32> to vector<4x256xf32>
    %67 = arith.mulf %65, %66 : vector<4x256xf32>
    %c20_66 = arith.constant 20 : index
    %c0_67 = arith.constant 0 : index
    %68 = vector.load %arg10[%c20_66, %c0_67] : memref<36x256xf32, #tpu.memory_space<vmem>>, vector<4x256xf32>
    tpu.vector_store %arg10[%c20_66, %c0_67], %67 {strides = array<i32>} : memref<36x256xf32, #tpu.memory_space<vmem>>, vector<4x256xf32>,
    %c0_68 = arith.constant 0 : index
    %c143_69 = arith.constant 143 : index
    %69 = vector.load %arg9[%c0_68, %c143_69] : memref<4x512xf32, #tpu.memory_space<vmem>>, vector<4x256xf32>
    %70 = vector.broadcast %0 : vector<1x256xf32> to vector<4x256xf32>
    %71 = arith.mulf %69, %70 : vector<4x256xf32>
    %c24_70 = arith.constant 24 : index
    %c0_71 = arith.constant 0 : index
    %72 = vector.load %arg10[%c24_70, %c0_71] : memref<36x256xf32, #tpu.memory_space<vmem>>, vector<4x256xf32>
    tpu.vector_store %arg10[%c24_70, %c0_71], %71 {strides = array<i32>} : memref<36x256xf32, #tpu.memory_space<vmem>>, vector<4x256xf32>,
    %c0_72 = arith.constant 0 : index
    %c144_73 = arith.constant 144 : index
    %73 = vector.load %arg9[%c0_72, %c144_73] : memref<4x512xf32, #tpu.memory_space<vmem>>, vector<4x256xf32>
    %c28_74 = arith.constant 28 : index
    %c0_75 = arith.constant 0 : index
    %74 = vector.load %arg10[%c28_74, %c0_75] : memref<36x256xf32, #tpu.memory_space<vmem>>, vector<4x256xf32>
    tpu.vector_store %arg10[%c28_74, %c0_75], %73 {strides = array<i32>} : memref<36x256xf32, #tpu.memory_space<vmem>>, vector<4x256xf32>,
    %c0_76 = arith.constant 0 : index
    %c145_77 = arith.constant 145 : index
    %75 = vector.load %arg9[%c0_76, %c145_77] : memref<4x512xf32, #tpu.memory_space<vmem>>, vector<4x256xf32>
    %76 = vector.broadcast %1 : vector<1x256xf32> to vector<4x256xf32>
    %77 = arith.mulf %75, %76 : vector<4x256xf32>
    %c32_78 = arith.constant 32 : index
    %c0_79 = arith.constant 0 : index
    %78 = vector.load %arg10[%c32_78, %c0_79] : memref<36x256xf32, #tpu.memory_space<vmem>>, vector<4x256xf32>
    tpu.vector_store %arg10[%c32_78, %c0_79], %77 {strides = array<i32>} : memref<36x256xf32, #tpu.memory_space<vmem>>, vector<4x256xf32>,
    %c0_80 = arith.constant 0 : index
    %c0_81 = arith.constant 0 : index
    %79 = vector.load %arg10[%c0_80, %c0_81] : memref<36x256xf32, #tpu.memory_space<vmem>>, vector<36x256xf32>
    %cst_82 = arith.constant dense<0.000000e+00> : vector<8x256xf32>
    %80 = tpu.matmul %47, %79, %cst_82 {dimension_numbers = #tpu.dot_dimension_numbers<[1], [0], [0], [1], [0, 0, 1, 1], [], []>} : vector<8x36xf32>, vector<36x256xf32>, vector<8x256xf32> -> vector<8x256xf32>
    %81 = vector.broadcast %48 : vector<8x1xf32> to vector<8x256xf32>
    %82 = arith.addf %80, %81 : vector<8x256xf32>
    %cst_83 = arith.constant 0.000000e+00 : f32
    %83 = vector.broadcast %cst_83 : f32 to vector<8x256xf32>
    %84 = arith.maximumf %82, %83 : vector<8x256xf32>
    %c0_84 = arith.constant 0 : index
    %c0_85 = arith.constant 0 : index
    %c0_86 = arith.constant 0 : index
    %85 = vector.load %arg8[%c0_84, %c0_85, %c0_86] : memref<1x8x256xf32, #tpu.memory_space<vmem>>, vector<1x8x256xf32>
    %86 = vector.shape_cast %85 : vector<1x8x256xf32> to vector<8x256xf32>
    %87 = vector.shape_cast %84 : vector<8x256xf32> to vector<1x8x256xf32>
    tpu.vector_store %arg8[%c0_84, %c0_85, %c0_86], %87 {strides = array<i32>} : memref<1x8x256xf32, #tpu.memory_space<vmem>>, vector<1x8x256xf32>,
    return
  }
  func.func @transform_0(%arg0: i32) -> (i32, i32, i32) {
    %c0_i32 = arith.constant 0 : i32
    %c0_i32_0 = arith.constant 0 : i32
    %c0_i32_1 = arith.constant 0 : i32
    return %arg0, %c0_i32, %c0_i32_0 : i32, i32, i32
  }
  func.func @transform_1(%arg0: i32) -> (i32, i32) {
    %c0_i32 = arith.constant 0 : i32
    %c0_i32_0 = arith.constant 0 : i32
    %c0_i32_1 = arith.constant 0 : i32
    return %c0_i32, %c0_i32_0 : i32, i32
  }
  func.func @transform_2(%arg0: i32) -> (i32, i32) {
    %c0_i32 = arith.constant 0 : i32
    %c0_i32_0 = arith.constant 0 : i32
    %c0_i32_1 = arith.constant 0 : i32
    return %c0_i32, %c0_i32_0 : i32, i32
  }
  func.func @transform_3(%arg0: i32) -> (i32, i32) {
    %c0_i32 = arith.constant 0 : i32
    %c0_i32_0 = arith.constant 0 : i32
    %c0_i32_1 = arith.constant 0 : i32
    return %c0_i32, %c0_i32_0 : i32, i32
  }
  func.func @transform_4(%arg0: i32) -> (i32, i32) {
    %c0_i32 = arith.constant 0 : i32
    %c0_i32_0 = arith.constant 0 : i32
    %c0_i32_1 = arith.constant 0 : i32
    return %c0_i32, %c0_i32_0 : i32, i32
  }
  func.func @transform_5(%arg0: i32) -> (i32, i32) {
    %c0_i32 = arith.constant 0 : i32
    %c0_i32_0 = arith.constant 0 : i32
    %c0_i32_1 = arith.constant 0 : i32
    return %c0_i32, %c0_i32_0 : i32, i32
  }
  func.func @transform_6(%arg0: i32) -> (i32, i32) {
    %c0_i32 = arith.constant 0 : i32
    %c0_i32_0 = arith.constant 0 : i32
    %c0_i32_1 = arith.constant 0 : i32
    return %c0_i32, %c0_i32_0 : i32, i32
  }
  func.func @transform_7(%arg0: i32) -> (i32, i32, i32) {
    %c0_i32 = arith.constant 0 : i32
    %c0_i32_0 = arith.constant 0 : i32
    %c0_i32_1 = arith.constant 0 : i32
    return %arg0, %c0_i32, %c0_i32_0 : i32, i32, i32
  }
}

</mosaic_0001>

<llo_original>
// kernel: block_forward.1
$region0: #{block_forward.1}
  #allocation0 [shape = 'u32[]', space=smem, size = 0x4, offset = 0x4, fixed_abs, tag = 'smem constant byte address 0x4 - core index']
  #allocation1 [shape = 'u32[144,128]{1,0:T(1,128)}', space=vmem, size = 0x12000, scoped, tag = 'internal scratch']
  #allocation2 [shape = 'f32[4,512]{1,0:T(4,128)}', space=vmem, size = 0x2000, scoped, tag = 'scratch operand']
  #allocation3 [shape = 'f32[36,256]{1,0:T(8,128)}', space=vmem, size = 0xa000, scoped, tag = 'scratch operand']
  %s0 = inlined_call_operand.vmem [shape: f32[2,4,256], index: 0, kind: input, shape index: {}]
  %s1 = inlined_call_operand.vmem [shape: f32[1,256], index: 1, kind: input, shape index: {}]
  %s2 = inlined_call_operand.vmem [shape: f32[1,256], index: 2, kind: input, shape index: {}]
  %s3 = inlined_call_operand.vmem [shape: f32[4,36], index: 3, kind: input, shape index: {}]
  %s4 = inlined_call_operand.vmem [shape: f32[4,1], index: 4, kind: input, shape index: {}]
  %s5 = inlined_call_operand.vmem [shape: f32[8,36], index: 5, kind: input, shape index: {}]
  %s6 = inlined_call_operand.vmem [shape: f32[8,1], index: 6, kind: input, shape index: {}]
  %s7 = inlined_call_operand.vmem [shape: f32[2,8,256], index: 7, kind: output, shape index: {}]
  %s8 = sld [smem:[#allocation0]]
  $region61: #{block_forward.1} parent=0
    _
  %s10 = ssub.s32 1, %s8
  %s11 = scalar_select 0, %s10, %s8
  loop: start=0, step=1, limit=4
  $region2: #{block_forward.1} parent=0 // loop_pre_header
    _
  $region3: #{block_forward.1} parent=0 // loop_header
    %s13 = sphi 0, %s17
    %p14 = scmp.ge.s32.totalorder %s13, 4
    %s23 = sphi 0, %s25
    %s26 = sphi 0, %s23
    %s27 = sphi 0, %s26
    %s43 = sphi 0, %s27
    %s47 = sphi 0, %s47
    %s49 = sphi 0, %s47
    %s50 = sphi 0, %s49
    %s64 = sphi 0, %s50
    %s68 = sphi 0, %s68
    %s70 = sphi 0, %s68
    %s71 = sphi 0, %s70
    %s85 = sphi 0, %s71
    %s89 = sphi 0, %s89
    %s91 = sphi 0, %s89
    %s92 = sphi 0, %s91
    %s106 = sphi 0, %s92
    %s110 = sphi 0, %s110
    %s112 = sphi 0, %s110
    %s113 = sphi 0, %s112
    %s127 = sphi 0, %s113
    %s131 = sphi 0, %s131
    %s133 = sphi 0, %s131
    %s134 = sphi 0, %s133
    %s148 = sphi 0, %s134
    %s152 = sphi 0, %s152
    %s154 = sphi 0, %s152
    %s155 = sphi 0, %s154
    %s169 = sphi 0, %s155
    %s175 = sphi 0, %s177
    %s178 = sphi 0, %s175
    %s179 = sphi 0, %s178
    %s195 = sphi 0, %s179
  $region4: #{block_forward.1} parent=0 // loop_header_branch
    %16 = sbr.rel (%p14) target = $region8
  $region5: #{block_forward.1} parent=0 // loop_body
    %s18 = ssub.s32 %s13, 1
    %s19 = ssub.s32 %s13, 2
    %s20 = sadd.s32 %s13, 1
    %s21 = ssub.s32 %s13, %s20
    %p22 = scmp.eq.s32.totalorder %s21, 0
    %s24 = sadd.s32 %s23, 1
    %s25 = scalar_select %p22, %s23, %s24
    %p28 = pneg %p22
    %p29 = scmp.eq.s32.totalorder %s13, 1
    %p30 = por %p28, %p29
    %p31 = scmp.ne.s32.totalorder %s23, %s26
    %p32 = scmp.eq.s32.totalorder %s13, 0
    %p33 = por %p31, %p32
    %p34 = scmp.ne.s32.totalorder %s23, %s26
    %p35 = scmp.eq.s32.totalorder %s18, 1
    %p36 = por %p34, %p35
    %p37 = scmp.ne.s32.totalorder %s26, %s27
    %p38 = scmp.eq.s32.totalorder %s18, 0
    %p39 = por %p37, %p38
    %p40 = scmp.ne.s32.totalorder %s26, %s27
    %p41 = scmp.eq.s32.totalorder %s19, 1
    %p42 = por %p40, %p41
    %p44 = scmp.ne.s32.totalorder %s27, %s43
    %p45 = scmp.eq.s32.totalorder %s19, 0
    %p46 = por %p44, %p45
    %s48 = sadd.s32 %s47, 1
    %p51 = scmp.eq.s32.totalorder %s13, 1
    %p52 = scmp.ne.s32.totalorder %s47, %s49
    %p53 = scmp.eq.s32.totalorder %s13, 0
    %p54 = por %p52, %p53
    %p55 = scmp.ne.s32.totalorder %s47, %s49
    %p56 = scmp.eq.s32.totalorder %s18, 1
    %p57 = por %p55, %p56
    %p58 = scmp.ne.s32.totalorder %s49, %s50
    %p59 = scmp.eq.s32.totalorder %s18, 0
    %p60 = por %p58, %p59
    %p61 = scmp.ne.s32.totalorder %s49, %s50
    %p62 = scmp.eq.s32.totalorder %s19, 1
    %p63 = por %p61, %p62
    %p65 = scmp.ne.s32.totalorder %s50, %s64
    %p66 = scmp.eq.s32.totalorder %s19, 0
    %p67 = por %p65, %p66
    %s69 = sadd.s32 %s68, 1
    %p72 = scmp.eq.s32.totalorder %s13, 1
    %p73 = scmp.ne.s32.totalorder %s68, %s70
    %p74 = scmp.eq.s32.totalorder %s13, 0
    %p75 = por %p73, %p74
    %p76 = scmp.ne.s32.totalorder %s68, %s70
    %p77 = scmp.eq.s32.totalorder %s18, 1
    %p78 = por %p76, %p77
    %p79 = scmp.ne.s32.totalorder %s70, %s71
    %p80 = scmp.eq.s32.totalorder %s18, 0
    %p81 = por %p79, %p80
    %p82 = scmp.ne.s32.totalorder %s70, %s71
    %p83 = scmp.eq.s32.totalorder %s19, 1
    %p84 = por %p82, %p83
    %p86 = scmp.ne.s32.totalorder %s71, %s85
    %p87 = scmp.eq.s32.totalorder %s19, 0
    %p88 = por %p86, %p87
    %s90 = sadd.s32 %s89, 1
    %p93 = scmp.eq.s32.totalorder %s13, 1
    %p94 = scmp.ne.s32.totalorder %s89, %s91
    %p95 = scmp.eq.s32.totalorder %s13, 0
    %p96 = por %p94, %p95
    %p97 = scmp.ne.s32.totalorder %s89, %s91
    %p98 = scmp.eq.s32.totalorder %s18, 1
    %p99 = por %p97, %p98
    %p100 = scmp.ne.s32.totalorder %s91, %s92
    %p101 = scmp.eq.s32.totalorder %s18, 0
    %p102 = por %p100, %p101
    %p103 = scmp.ne.s32.totalorder %s91, %s92
    %p104 = scmp.eq.s32.totalorder %s19, 1
    %p105 = por %p103, %p104
    %p107 = scmp.ne.s32.totalorder %s92, %s106
    %p108 = scmp.eq.s32.totalorder %s19, 0
    %p109 = por %p107, %p108
    %s111 = sadd.s32 %s110, 1
    %p114 = scmp.eq.s32.totalorder %s13, 1
    %p115 = scmp.ne.s32.totalorder %s110, %s112
    %p116 = scmp.eq.s32.totalorder %s13, 0
    %p117 = por %p115, %p116
    %p118 = scmp.ne.s32.totalorder %s110, %s112
    %p119 = scmp.eq.s32.totalorder %s18, 1
    %p120 = por %p118, %p119
    %p121 = scmp.ne.s32.totalorder %s112, %s113
    %p122 = scmp.eq.s32.totalorder %s18, 0
    %p123 = por %p121, %p122
    %p124 = scmp.ne.s32.totalorder %s112, %s113
    %p125 = scmp.eq.s32.totalorder %s19, 1
    %p126 = por %p124, %p125
    %p128 = scmp.ne.s32.totalorder %s113, %s127
    %p129 = scmp.eq.s32.totalorder %s19, 0
    %p130 = por %p128, %p129
    %s132 = sadd.s32 %s131, 1
    %p135 = scmp.eq.s32.totalorder %s13, 1
    %p136 = scmp.ne.s32.totalorder %s131, %s133
    %p137 = scmp.eq.s32.totalorder %s13, 0
    %p138 = por %p136, %p137
    %p139 = scmp.ne.s32.totalorder %s131, %s133
    %p140 = scmp.eq.s32.totalorder %s18, 1
    %p141 = por %p139, %p140
    %p142 = scmp.ne.s32.totalorder %s133, %s134
    %p143 = scmp.eq.s32.totalorder %s18, 0
    %p144 = por %p142, %p143
    %p145 = scmp.ne.s32.totalorder %s133, %s134
    %p146 = scmp.eq.s32.totalorder %s19, 1
    %p147 = por %p145, %p146
    %p149 = scmp.ne.s32.totalorder %s134, %s148
    %p150 = scmp.eq.s32.totalorder %s19, 0
    %p151 = por %p149, %p150
    %s153 = sadd.s32 %s152, 1
    %p156 = scmp.eq.s32.totalorder %s13, 1
    %p157 = scmp.ne.s32.totalorder %s152, %s154
    %p158 = scmp.eq.s32.totalorder %s13, 0
    %p159 = por %p157, %p158
    %p160 = scmp.ne.s32.totalorder %s152, %s154
    %p161 = scmp.eq.s32.totalorder %s18, 1
    %p162 = por %p160, %p161
    %p163 = scmp.ne.s32.totalorder %s154, %s155
    %p164 = scmp.eq.s32.totalorder %s18, 0
    %p165 = por %p163, %p164
    %p166 = scmp.ne.s32.totalorder %s154, %s155
    %p167 = scmp.eq.s32.totalorder %s19, 1
    %p168 = por %p166, %p167
    %p170 = scmp.ne.s32.totalorder %s155, %s169
    %p171 = scmp.eq.s32.totalorder %s19, 0
    %p172 = por %p170, %p171
    %s173 = ssub.s32 %s13, %s20
    %p174 = scmp.eq.s32.totalorder %s173, 0
    %s176 = sadd.s32 %s175, 1
    %s177 = scalar_select %p174, %s175, %s176
    %p180 = pneg %p174
    %p181 = scmp.eq.s32.totalorder %s13, 1
    %p182 = por %p180, %p181
    %p183 = scmp.ne.s32.totalorder %s175, %s178
    %p184 = scmp.eq.s32.totalorder %s13, 0
    %p185 = por %p183, %p184
    %p186 = scmp.ne.s32.totalorder %s175, %s178
    %p187 = scmp.eq.s32.totalorder %s18, 1
    %p188 = por %p186, %p187
    %p189 = scmp.ne.s32.totalorder %s178, %s179
    %p190 = scmp.eq.s32.totalorder %s18, 0
    %p191 = por %p189, %p190
    %p192 = scmp.ne.s32.totalorder %s178, %s179
    %p193 = scmp.eq.s32.totalorder %s19, 1
    %p194 = por %p192, %p193
    %p196 = scmp.ne.s32.totalorder %s179, %s195
    %p197 = scmp.eq.s32.totalorder %s19, 0
    %p198 = por %p196, %p197
    %p199 = scmp.le.s32.totalorder 1, %s13
    %p200 = scmp.lt.s32.totalorder %s13, 3
    %p201 = pnand %p199, %p200
    %p202 = pneg %p201
    // Predicated region
    $region9: #{block_forward.1} parent=5 // pred_check
      _
    $region10: #{block_forward.1} parent=5 // pred_check_branch
      %204 = sbr.rel (%p201) target = $region12
    $region11: #{block_forward.1} parent=5 // pred_region
      %s205 = ssub.s32 %s13, 1
      // Predicated region
      $region13: #{block_forward.1} parent=11 // pred_check
        %p206 = pneg %p60
      $region14: #{block_forward.1} parent=11 // pred_check_branch
        %208 = sbr.rel (%p206) target = $region16
      $region15: #{block_forward.1} parent=11 // pred_region
        _
      $region16: #{block_forward.1} parent=11 // pred_fallthru
        _
      // Predicated region
      $region17: #{block_forward.1} parent=11 // pred_check
        %p209 = pneg %p81
      $region18: #{block_forward.1} parent=11 // pred_check_branch
        %211 = sbr.rel (%p209) target = $region20
      $region19: #{block_forward.1} parent=11 // pred_region
        _
      $region20: #{block_forward.1} parent=11 // pred_fallthru
        _
      // Predicated region
      $region21: #{block_forward.1} parent=11 // pred_check
        %p212 = pneg %p102
      $region22: #{block_forward.1} parent=11 // pred_check_branch
        %214 = sbr.rel (%p212) target = $region24
      $region23: #{block_forward.1} parent=11 // pred_region
        _
      $region24: #{block_forward.1} parent=11 // pred_fallthru
        _
      // Predicated region
      $region25: #{block_forward.1} parent=11 // pred_check
        %p215 = pneg %p123
      $region26: #{block_forward.1} parent=11 // pred_check_branch
        %217 = sbr.rel (%p215) target = $region28
      $region27: #{block_forward.1} parent=11 // pred_region
        _
      $region28: #{block_forward.1} parent=11 // pred_fallthru
        _
      // Predicated region
      $region29: #{block_forward.1} parent=11 // pred_check
        %p218 = pneg %p144
      $region30: #{block_forward.1} parent=11 // pred_check_branch
        %220 = sbr.rel (%p218) target = $region32
      $region31: #{block_forward.1} parent=11 // pred_region
        _
      $region32: #{block_forward.1} parent=11 // pred_fallthru
        _
      // Predicated region
      $region33: #{block_forward.1} parent=11 // pred_check
        %p221 = pneg %p165
      $region34: #{block_forward.1} parent=11 // pred_check_branch
        %223 = sbr.rel (%p221) target = $region36
      $region35: #{block_forward.1} parent=11 // pred_region
        _
      $region36: #{block_forward.1} parent=11 // pred_fallthru
        _
    $region12: #{block_forward.1} parent=5 // pred_fallthru
      _
    %p224 = scmp.lt.s32.totalorder %s13, 2
    // Predicated region
    $region37: #{block_forward.1} parent=5 // pred_check
      %p225 = pneg %p224
    $region38: #{block_forward.1} parent=5 // pred_check_branch
      %227 = sbr.rel (%p225) target = $region40
    $region39: #{block_forward.1} parent=5 // pred_region
      // Predicated region
      $region41: #{block_forward.1} parent=39 // pred_check
        %p228 = pneg %p33
      $region42: #{block_forward.1} parent=39 // pred_check_branch
        %230 = sbr.rel (%p228) target = $region44
      $region43: #{block_forward.1} parent=39 // pred_region
        %p231 = scmp.lt.s32.totalorder %s13, 1
        %s232 = scalar_select %p231, %s13, 1
        %s233 = smul.addr %s232, 2
        %s234 = smul.addr %s233, 4
        %s235 = scalar_lea.vmem %s0, %s234
      $region44: #{block_forward.1} parent=39 // pred_fallthru
        _
    $region40: #{block_forward.1} parent=5 // pred_fallthru
      _
    %p236 = scmp.le.s32.totalorder 1, %s13
    %p237 = scmp.lt.s32.totalorder %s13, 3
    %p238 = pnand %p236, %p237
    %p239 = pneg %p238
    // Predicated region
    $region45: #{block_forward.1} parent=5 // pred_check
      _
    $region46: #{block_forward.1} parent=5 // pred_check_branch
      %241 = sbr.rel (%p238) target = $region48
    $region47: #{block_forward.1} parent=5 // pred_region
      %s242 = ssub.s32 %s13, 1
      %p243 = scmp.lt.s32.totalorder %s18, 1
      %s244 = scalar_select %p243, %s18, 1
      %s245 = smul.addr %s244, 2
      %s246 = smul.addr %s245, 4
      %s247 = scalar_lea.vmem %s0, %s246
      %p248 = pneg %p39
      %p249 = pneg %p36
      %p250 = pneg %p60
      %p251 = pneg %p57
      %p252 = pneg %p81
      %p253 = pneg %p78
      %p254 = pneg %p102
      %p255 = pneg %p99
      %p256 = pneg %p123
      %p257 = pneg %p120
      %p258 = pneg %p144
      %p259 = pneg %p141
      %p260 = pneg %p165
      %p261 = pneg %p162
      %p262 = pneg %p191
      %p263 = pneg %p188
      %p264 = scmp.lt.s32.totalorder %s18, 1
      %s265 = scalar_select %p264, %s18, 1
      %s266 = smul.addr %s265, 2
      %s267 = smul.addr %s266, 8
      %s268 = scalar_lea.vmem %s7, %s267
      %p269 = scmp.lt.s32.totalorder %s18, 1
      %s270 = scalar_select %p269, %s18, 1
      %s271 = smul.addr %s270, 2
      %s272 = smul.addr %s271, 4
      %s273 = scalar_lea.vmem %s0, %s272
      %p274 = scmp.lt.s32.totalorder %s18, 1
      %s275 = scalar_select %p274, %s18, 1
      %s276 = smul.addr %s275, 2
      %s277 = smul.addr %s276, 8
      %s278 = scalar_lea.vmem %s7, %s277
      %v279 = vld [vmem:[%s1] sm:$0x3]
      %v280 = vld [vmem:[%s2] sm:$0x3]
      %281 = vst [vmem:[#allocation2] sm:$0xf] 0.0
      %282 = vst [vmem:[#allocation2 + $0xc] sm:$0xf] 0.0
      %v283 = vld [vmem:[%s273] sm:$0xff]
      %284 = vst [vmem:[#allocation2 + $0x4] sm:$0xff] %v283
      %v285 = vld [vmem:[%s3] sm:$0xf]
      %v286 = vld [vmem:[%s4] sm:$0xf]
      %v287 = vld [vmem:[#allocation2] sm:$0xff]
      %v288 = vld [vmem:[#allocation2 + $0x8] sm:$0xf]
      %v290 = vlaneseq
      %v291 = vshrl.u32 %v290, 7
      %v292 = vsub.s32 0, %v291
      %v293 = vrot.slane %v279, %v292
      %v294 = vlaneseq
      %v295 = vshrl.u32 %v294, 7
      %v296 = vsub.s32 1, %v295
      %v297 = vrot.slane %v279, %v296
      %v298 = vcombine.low %v293, %v297
      %299 = vrot.lane.b32.xlu0 %v298, 111
      %v300 = vpop.permute.xlu0 %299
      %v301 = vrot.slane %v300, 4
      %vm302 = vcmask 908288
      %v303 = vsel %vm302, %v301, %v300
      %v306 = vmul.f32 %v287, %v303
      %v307 = vmul.f32 %v288, %v301
      %v310 = vcombine.high %v306, %v306
      %311 = vrot.lane.b32.xlu0 %v306, 17
      %v312 = vpop.permute.xlu0 %311
      %313 = vrot.lane.b32.xlu0 %v310, 17
      %v314 = vpop.permute.xlu0 %313
      %315 = vrot.lane.b32.xlu0 %v307, 17
      %v316 = vpop.permute.xlu0 %315
      %vm317 = vcmask 138240
      %v318 = vsel %vm317, %v312, %v314
      %v319 = vsel %vm317, %v314, %v316
      %322 = vst [vmem:[#allocation3] sm:$0xf] %v318
      %323 = vst [vmem:[#allocation3 + $0x8] sm:$0xf] %v319
      %v324 = vld [vmem:[#allocation2] sm:$0xff]
      %v325 = vld [vmem:[#allocation2 + $0x8] sm:$0xf]
      %v328 = vcombine.low %v324, %v324
      %v329 = vcombine.low %v325, %v325
      %330 = vrot.lane.b32.xlu0 %v328, 16
      %v331 = vpop.permute.xlu0 %330
      %332 = vrot.lane.b32.xlu0 %v324, 16
      %v333 = vpop.permute.xlu0 %332
      %334 = vrot.lane.b32.xlu0 %v329, 16
      %v335 = vpop.permute.xlu0 %334
      %vm336 = vcmask 130048
      %v337 = vsel %vm336, %v331, %v333
      %v338 = vsel %vm336, %v333, %v335
      %341 = vst [vmem:[#allocation3] sm:$0xf0] %v337
      %342 = vst [vmem:[#allocation3 + $0x8] sm:$0xf0] %v338
      %v343 = vld [vmem:[#allocation2] sm:$0xff]
      %v344 = vld [vmem:[#allocation2 + $0x8] sm:$0xf]
      %v346 = vlaneseq
      %v347 = vshrl.u32 %v346, 7
      %v348 = vsub.s32 0, %v347
      %v349 = vrot.slane %v280, %v348
      %v350 = vlaneseq
      %v351 = vshrl.u32 %v350, 7
      %v352 = vsub.s32 1, %v351
      %v353 = vrot.slane %v280, %v352
      %v354 = vcombine.low %v349, %v353
      %355 = vrot.lane.b32.xlu0 %v354, 113
      %v356 = vpop.permute.xlu0 %355
      %v357 = vrot.slane %v356, 4
      %vm358 = vcmask 924672
      %v359 = vsel %vm358, %v357, %v356
      %v362 = vmul.f32 %v343, %v359
      %v363 = vmul.f32 %v344, %v357
      %v366 = vcombine.high %v362, %v362
      %367 = vrot.lane.b32.xlu0 %v362, 15
      %v368 = vpop.permute.xlu0 %367
      %369 = vrot.lane.b32.xlu0 %v366, 15
      %v370 = vpop.permute.xlu0 %369
      %371 = vrot.lane.b32.xlu0 %v363, 15
      %v372 = vpop.permute.xlu0 %371
      %vm373 = vcmask 121856
      %v374 = vsel %vm373, %v368, %v370
      %v375 = vsel %vm373, %v370, %v372
      %378 = vst [vmem:[#allocation3 + $0x10] sm:$0xf] %v374
      %379 = vst [vmem:[#allocation3 + $0x18] sm:$0xf] %v375
      %v380 = vld [vmem:[#allocation2] sm:$0xff]
      %v381 = vld [vmem:[#allocation2 + $0x8] sm:$0xf]
      %382 = vrot.lane.b32.xlu0 %v298, 127
      %v383 = vpop.permute.xlu0 %382
      %v384 = vrot.slane %v383, 4
      %vm385 = vcmask 1039360
      %v386 = vsel %vm385, %v384, %v383
      %v389 = vmul.f32 %v380, %v386
      %v390 = vmul.f32 %v381, %v384
      %v393 = vcombine.low %v389, %v389
      %v394 = vcombine.low %v390, %v390
      %395 = vrot.lane.b32.xlu0 %v393, 1
      %v396 = vpop.permute.xlu0 %395
      %397 = vrot.lane.b32.xlu0 %v389, 1
      %v398 = vpop.permute.xlu0 %397
      %399 = vrot.lane.b32.xlu0 %v394, 1
      %v400 = vpop.permute.xlu0 %399
      %vm401 = vcmask 7168
      %v402 = vsel %vm401, %v396, %v398
      %v403 = vsel %vm401, %v398, %v400
      %406 = vst [vmem:[#allocation3 + $0x10] sm:$0xf0] %v402
      %407 = vst [vmem:[#allocation3 + $0x18] sm:$0xf0] %v403
      %v408 = vld [vmem:[#allocation2 + $0x4] sm:$0xff]
      %v410 = vcombine.high %v408, %v408
      %412 = vst [vmem:[#allocation3 + $0x20] sm:$0xf] %v408
      %413 = vst [vmem:[#allocation3 + $0x28] sm:$0xf] %v410
      %v414 = vld [vmem:[#allocation2 + $0x4] sm:$0xff]
      %v415 = vld [vmem:[#allocation2 + $0xc] sm:$0xf]
      %416 = vrot.lane.b32.xlu0 %v354, 1
      %v417 = vpop.permute.xlu0 %416
      %v418 = vrot.slane %v417, 4
      %v419 = vsel %vm401, %v418, %v417
      %v422 = vmul.f32 %v414, %v419
      %v423 = vmul.f32 %v415, %v418
      %v426 = vcombine.low %v422, %v422
      %v427 = vcombine.low %v423, %v423
      %428 = vrot.lane.b32.xlu0 %v426, 127
      %v429 = vpop.permute.xlu0 %428
      %430 = vrot.lane.b32.xlu0 %v422, 127
      %v431 = vpop.permute.xlu0 %430
      %432 = vrot.lane.b32.xlu0 %v427, 127
      %v433 = vpop.permute.xlu0 %432
      %v434 = vsel %vm385, %v429, %v431
      %v435 = vsel %vm385, %v431, %v433
      %438 = vst [vmem:[#allocation3 + $0x20] sm:$0xf0] %v434
      %439 = vst [vmem:[#allocation3 + $0x28] sm:$0xf0] %v435
      %v440 = vld [vmem:[#allocation2 + $0x4] sm:$0xff]
      %v441 = vld [vmem:[#allocation2 + $0xc] sm:$0xf]
      %442 = vrot.lane.b32.xlu0 %v298, 15
      %v443 = vpop.permute.xlu0 %442
      %v444 = vrot.slane %v443, 4
      %v445 = vsel %vm373, %v444, %v443
      %v448 = vmul.f32 %v440, %v445
      %v449 = vmul.f32 %v441, %v444
      %v452 = vcombine.high %v448, %v448
      %453 = vrot.lane.b32.xlu0 %v448, 113
      %v454 = vpop.permute.xlu0 %453
      %455 = vrot.lane.b32.xlu0 %v452, 113
      %v456 = vpop.permute.xlu0 %455
      %457 = vrot.lane.b32.xlu0 %v449, 113
      %v458 = vpop.permute.xlu0 %457
      %v459 = vsel %vm358, %v454, %v456
      %v460 = vsel %vm358, %v456, %v458
      %463 = vst [vmem:[#allocation3 + $0x30] sm:$0xf] %v459
      %464 = vst [vmem:[#allocation3 + $0x38] sm:$0xf] %v460
      %v465 = vld [vmem:[#allocation2 + $0x4] sm:$0xff]
      %v466 = vld [vmem:[#allocation2 + $0xc] sm:$0xf]
      %v469 = vcombine.low %v465, %v465
      %v470 = vcombine.low %v466, %v466
      %471 = vrot.lane.b32.xlu0 %v469, 112
      %v472 = vpop.permute.xlu0 %471
      %473 = vrot.lane.b32.xlu0 %v465, 112
      %v474 = vpop.permute.xlu0 %473
      %475 = vrot.lane.b32.xlu0 %v470, 112
      %v476 = vpop.permute.xlu0 %475
      %vm477 = vcmask 916480
      %v478 = vsel %vm477, %v472, %v474
      %v479 = vsel %vm477, %v474, %v476
      %482 = vst [vmem:[#allocation3 + $0x30] sm:$0xf0] %v478
      %483 = vst [vmem:[#allocation3 + $0x38] sm:$0xf0] %v479
      %v484 = vld [vmem:[#allocation2 + $0x4] sm:$0xff]
      %v485 = vld [vmem:[#allocation2 + $0xc] sm:$0xf]
      %486 = vrot.lane.b32.xlu0 %v354, 17
      %v487 = vpop.permute.xlu0 %486
      %v488 = vrot.slane %v487, 4
      %v489 = vsel %vm317, %v488, %v487
      %v492 = vmul.f32 %v484, %v489
      %v493 = vmul.f32 %v485, %v488
      %v496 = vcombine.high %v492, %v492
      %497 = vrot.lane.b32.xlu0 %v492, 111
      %v498 = vpop.permute.xlu0 %497
      %499 = vrot.lane.b32.xlu0 %v496, 111
      %v500 = vpop.permute.xlu0 %499
      %501 = vrot.lane.b32.xlu0 %v493, 111
      %v502 = vpop.permute.xlu0 %501
      %v503 = vsel %vm302, %v498, %v500
      %v504 = vsel %vm302, %v500, %v502
      %507 = vst [vmem:[#allocation3 + $0x40] sm:$0xf] %v503
      %508 = vst [vmem:[#allocation3 + $0x48] sm:$0xf] %v504
      %v509 = vld [vmem:[#allocation3] sm:$0xff]
      %v510 = vld [vmem:[#allocation3 + $0x8] sm:$0xff]
      %v511 = vld [vmem:[#allocation3 + $0x10] sm:$0xff]
      %v512 = vld [vmem:[#allocation3 + $0x18] sm:$0xff]
      %v513 = vld [vmem:[#allocation3 + $0x20] sm:$0xff]
      %v514 = vld [vmem:[#allocation3 + $0x28] sm:$0xff]
      %v515 = vld [vmem:[#allocation3 + $0x30] sm:$0xff]
      %v516 = vld [vmem:[#allocation3 + $0x38] sm:$0xff]
      %v517 = vld [vmem:[#allocation3 + $0x40] sm:$0xf]
      %v518 = vld [vmem:[#allocation3 + $0x48] sm:$0xf]
      %520 = vset.pattern.permute.xlu0 0
      %521 = vperm.xlu0 %520, %v286
      %v522 = vpop.permute.xlu0 %521
      %vm524 = vcmask 293888
      %v526 = vsel %vm524, %v285, 0
      %vm528 = vcmask 1043456
      %v530 = vsel %vm528, %v517, 0
      %v533 = vsel %vm528, %v518, 0
      %535 = vmatprep.subr.mxu0 %v510
      %536 = vmatpush1.msra.mxu0 %v509
      %537 = vmatprep.subr.mxu0 %v512
      %538 = vmatpush1.msra.mxu0 %v511
      %539 = vmatprep.subr.mxu0 %v514
      %540 = vmatpush1.msra.mxu0 %v513
      %541 = vmatprep.subr.mxu0 %v516
      %542 = vmatpush1.msra.mxu0 %v515
      %543 = vmatprep.subr.mxu0 %v533
      %544 = vmatpush1.msra.mxu0 %v530
      %545 = vmatprep.subr.mxu0 0.0
      %546 = vmatpush1.msra.mxu0 0.0
      %547 = vmatprep.subr.mxu0 0.0
      %548 = vmatpush1.msra.mxu0 0.0
      %549 = vmatprep.subr.mxu0 0.0
      %550 = vmatpush1.msra.mxu0 0.0
      %551 = vmatprep.subr.mxu0 0.0
      %552 = vmatpush1.msra.mxu0 0.0
      %553 = vmatprep.subr.mxu0 0.0
      %554 = vmatpush1.msra.mxu0 0.0
      %555 = vmatprep.subr.mxu0 0.0
      %556 = vmatpush1.msra.mxu0 0.0
      %557 = vmatprep.subr.mxu0 0.0
      %558 = vmatpush1.msra.mxu0 0.0
      %559 = vmatprep.subr.mxu0 0.0
      %560 = vmatpush1.msra.mxu0 0.0
      %561 = vmatprep.subr.mxu0 0.0
      %562 = vmatpush1.msra.mxu0 0.0
      %563 = vmatprep.subr.mxu0 0.0
      %564 = vmatpush1.msra.mxu0 0.0
      %565 = vmatprep.subr.mxu0 0.0
      %566 = vmatpush1.msra.mxu0 0.0
      %567 = vmatprep.subr.mxu0 0.0
      %568 = vmatpush1.msra.mxu0 0.0
      %569 = vmatprep.subr.mxu0 0.0
      %570 = vmatpush1.msra.mxu0 0.0
      %571 = vmatprep.subr.mxu0 0.0
      %572 = vmatpush1.msra.mxu0 0.0
      %573 = vmatprep.subr.mxu0 0.0
      %574 = vmatpush1.msra.mxu0 0.0
      %575 = vmatprep.subr.mxu0 0.0
      %576 = vmatpush1.msra.mxu0 0.0
      %577 = vmatprep.subr.mxu0 0.0
      %578 = vmatpush1.msra.mxu0 0.0
      %579 = vmatprep.subr.mxu0 0.0
      %580 = vmatpush1.msra.mxu0 0.0
      %581 = vmatprep.subr.mxu0 0.0
      %582 = vmatpush1.msra.mxu0 0.0
      %583 = vmatprep.subr.mxu0 0.0
      %584 = vmatpush1.msra.mxu0 0.0
      %585 = vmatprep.subr.mxu0 0.0
      %586 = vmatpush1.msra.mxu0 0.0
      %587 = vmatprep.subr.mxu0 0.0
      %588 = vmatpush1.msra.mxu0 0.0
      %589 = vmatprep.subr.mxu0 0.0
      %590 = vmatpush1.msra.mxu0 0.0
      %591 = vmatprep.subr.mxu0 0.0
      %592 = vmatpush1.msra.mxu0 0.0
      %593 = vmatprep.subr.mxu0 0.0
      %594 = vmatpush1.msra.mxu0 0.0
      %595 = vmatprep.subr.mxu0 0.0
      %596 = vmatpush1.msra.mxu0 0.0
      %597 = vmatprep.subr.mxu0 0.0
      %598 = vmatpush1.msra.mxu0 0.0
      %599 = vmatprep.mubr.f32.mxu0 0.0
      %600 = vmatmul.mubr.f32.gmra.mrb[0].mxu0 %v526
      %v601 = vpop.f32.mrb[0].mxu0
      %v602 = vadd.f32 %v522, %v601
      %v603 = vpop.f32.mrb[0].mxu0
      %v604 = vadd.f32 %v522, %v603
      %605 = vdwg.mxu0
      %v606 = vmax.f32 %v602, 0.0
      %v607 = vmax.f32 %v604, 0.0
      %v610 = vcombine.low %v606, %v607
      %612 = vst [vmem:[#allocation2 + $0x4] sm:$0xff] %v610
      %v613 = vld [vmem:[%s5] sm:$0xff]
      %v614 = vld [vmem:[%s6] sm:$0xff]
      %v615 = vld [vmem:[#allocation2] sm:$0xff]
      %v616 = vld [vmem:[#allocation2 + $0x8] sm:$0xf]
      %v617 = vmul.f32 %v615, %v303
      %v618 = vmul.f32 %v616, %v301
      %v621 = vcombine.high %v617, %v617
      %622 = vrot.lane.b32.xlu0 %v617, 17
      %v623 = vpop.permute.xlu0 %622
      %624 = vrot.lane.b32.xlu0 %v621, 17
      %v625 = vpop.permute.xlu0 %624
      %626 = vrot.lane.b32.xlu0 %v618, 17
      %v627 = vpop.permute.xlu0 %626
      %v628 = vsel %vm317, %v623, %v625
      %v629 = vsel %vm317, %v625, %v627
      %632 = vst [vmem:[#allocation3] sm:$0xf] %v628
      %633 = vst [vmem:[#allocation3 + $0x8] sm:$0xf] %v629
      %v634 = vld [vmem:[#allocation2] sm:$0xff]
      %v635 = vld [vmem:[#allocation2 + $0x8] sm:$0xf]
      %v638 = vcombine.low %v634, %v634
      %v639 = vcombine.low %v635, %v635
      %640 = vrot.lane.b32.xlu0 %v638, 16
      %v641 = vpop.permute.xlu0 %640
      %642 = vrot.lane.b32.xlu0 %v634, 16
      %v643 = vpop.permute.xlu0 %642
      %644 = vrot.lane.b32.xlu0 %v639, 16
      %v645 = vpop.permute.xlu0 %644
      %v646 = vsel %vm336, %v641, %v643
      %v647 = vsel %vm336, %v643, %v645
      %650 = vst [vmem:[#allocation3] sm:$0xf0] %v646
      %651 = vst [vmem:[#allocation3 + $0x8] sm:$0xf0] %v647
      %v652 = vld [vmem:[#allocation2] sm:$0xff]
      %v653 = vld [vmem:[#allocation2 + $0x8] sm:$0xf]
      %v654 = vmul.f32 %v652, %v359
      %v655 = vmul.f32 %v653, %v357
      %v658 = vcombine.high %v654, %v654
      %659 = vrot.lane.b32.xlu0 %v654, 15
      %v660 = vpop.permute.xlu0 %659
      %661 = vrot.lane.b32.xlu0 %v658, 15
      %v662 = vpop.permute.xlu0 %661
      %663 = vrot.lane.b32.xlu0 %v655, 15
      %v664 = vpop.permute.xlu0 %663
      %v665 = vsel %vm373, %v660, %v662
      %v666 = vsel %vm373, %v662, %v664
      %669 = vst [vmem:[#allocation3 + $0x10] sm:$0xf] %v665
      %670 = vst [vmem:[#allocation3 + $0x18] sm:$0xf] %v666
      %v671 = vld [vmem:[#allocation2] sm:$0xff]
      %v672 = vld [vmem:[#allocation2 + $0x8] sm:$0xf]
      %v673 = vmul.f32 %v671, %v386
      %v674 = vmul.f32 %v672, %v384
      %v677 = vcombine.low %v673, %v673
      %v678 = vcombine.low %v674, %v674
      %679 = vrot.lane.b32.xlu0 %v677, 1
      %v680 = vpop.permute.xlu0 %679
      %681 = vrot.lane.b32.xlu0 %v673, 1
      %v682 = vpop.permute.xlu0 %681
      %683 = vrot.lane.b32.xlu0 %v678, 1
      %v684 = vpop.permute.xlu0 %683
      %v685 = vsel %vm401, %v680, %v682
      %v686 = vsel %vm401, %v682, %v684
      %689 = vst [vmem:[#allocation3 + $0x10] sm:$0xf0] %v685
      %690 = vst [vmem:[#allocation3 + $0x18] sm:$0xf0] %v686
      %v691 = vld [vmem:[#allocation2 + $0x4] sm:$0xff]
      %v693 = vcombine.high %v691, %v691
      %695 = vst [vmem:[#allocation3 + $0x20] sm:$0xf] %v691
      %696 = vst [vmem:[#allocation3 + $0x28] sm:$0xf] %v693
      %v697 = vld [vmem:[#allocation2 + $0x4] sm:$0xff]
      %v698 = vld [vmem:[#allocation2 + $0xc] sm:$0xf]
      %v699 = vmul.f32 %v697, %v419
      %v700 = vmul.f32 %v698, %v418
      %v703 = vcombine.low %v699, %v699
      %v704 = vcombine.low %v700, %v700
      %705 = vrot.lane.b32.xlu0 %v703, 127
      %v706 = vpop.permute.xlu0 %705
      %707 = vrot.lane.b32.xlu0 %v699, 127
      %v708 = vpop.permute.xlu0 %707
      %709 = vrot.lane.b32.xlu0 %v704, 127
      %v710 = vpop.permute.xlu0 %709
      %v711 = vsel %vm385, %v706, %v708
      %v712 = vsel %vm385, %v708, %v710
      %715 = vst [vmem:[#allocation3 + $0x20] sm:$0xf0] %v711
      %716 = vst [vmem:[#allocation3 + $0x28] sm:$0xf0] %v712
      %v717 = vld [vmem:[#allocation2 + $0x4] sm:$0xff]
      %v718 = vld [vmem:[#allocation2 + $0xc] sm:$0xf]
      %v719 = vmul.f32 %v717, %v445
      %v720 = vmul.f32 %v718, %v444
      %v723 = vcombine.high %v719, %v719
      %724 = vrot.lane.b32.xlu0 %v719, 113
      %v725 = vpop.permute.xlu0 %724
      %726 = vrot.lane.b32.xlu0 %v723, 113
      %v727 = vpop.permute.xlu0 %726
      %728 = vrot.lane.b32.xlu0 %v720, 113
      %v729 = vpop.permute.xlu0 %728
      %v730 = vsel %vm358, %v725, %v727
      %v731 = vsel %vm358, %v727, %v729
      %734 = vst [vmem:[#allocation3 + $0x30] sm:$0xf] %v730
      %735 = vst [vmem:[#allocation3 + $0x38] sm:$0xf] %v731
      %v736 = vld [vmem:[#allocation2 + $0x4] sm:$0xff]
      %v737 = vld [vmem:[#allocation2 + $0xc] sm:$0xf]
      %v740 = vcombine.low %v736, %v736
      %v741 = vcombine.low %v737, %v737
      %742 = vrot.lane.b32.xlu0 %v740, 112
      %v743 = vpop.permute.xlu0 %742
      %744 = vrot.lane.b32.xlu0 %v736, 112
      %v745 = vpop.permute.xlu0 %744
      %746 = vrot.lane.b32.xlu0 %v741, 112
      %v747 = vpop.permute.xlu0 %746
      %v748 = vsel %vm477, %v743, %v745
      %v749 = vsel %vm477, %v745, %v747
      %752 = vst [vmem:[#allocation3 + $0x30] sm:$0xf0] %v748
      %753 = vst [vmem:[#allocation3 + $0x38] sm:$0xf0] %v749
      %v754 = vld [vmem:[#allocation2 + $0x4] sm:$0xff]
      %v755 = vld [vmem:[#allocation2 + $0xc] sm:$0xf]
      %v756 = vmul.f32 %v754, %v489
      %v757 = vmul.f32 %v755, %v488
      %v760 = vcombine.high %v756, %v756
      %761 = vrot.lane.b32.xlu0 %v756, 111
      %v762 = vpop.permute.xlu0 %761
      %763 = vrot.lane.b32.xlu0 %v760, 111
      %v764 = vpop.permute.xlu0 %763
      %765 = vrot.lane.b32.xlu0 %v757, 111
      %v766 = vpop.permute.xlu0 %765
      %v767 = vsel %vm302, %v762, %v764
      %v768 = vsel %vm302, %v764, %v766
      %771 = vst [vmem:[#allocation3 + $0x40] sm:$0xf] %v767
      %772 = vst [vmem:[#allocation3 + $0x48] sm:$0xf] %v768
      %v773 = vld [vmem:[#allocation3] sm:$0xff]
      %v774 = vld [vmem:[#allocation3 + $0x8] sm:$0xff]
      %v775 = vld [vmem:[#allocation3 + $0x10] sm:$0xff]
      %v776 = vld [vmem:[#allocation3 + $0x18] sm:$0xff]
      %v777 = vld [vmem:[#allocation3 + $0x20] sm:$0xff]
      %v778 = vld [vmem:[#allocation3 + $0x28] sm:$0xff]
      %v779 = vld [vmem:[#allocation3 + $0x30] sm:$0xff]
      %v780 = vld [vmem:[#allocation3 + $0x38] sm:$0xff]
      %v781 = vld [vmem:[#allocation3 + $0x40] sm:$0xf]
      %v782 = vld [vmem:[#allocation3 + $0x48] sm:$0xf]
      %784 = vset.pattern.permute.xlu0 0
      %785 = vperm.xlu0 %784, %v614
      %v786 = vpop.permute.xlu0 %785
      %v789 = vsel %vm524, %v613, 0
      %v792 = vsel %vm528, %v781, 0
      %v795 = vsel %vm528, %v782, 0
      %797 = vmatprep.subr.mxu0 %v774
      %798 = vmatpush1.msra.mxu0 %v773
      %799 = vmatprep.subr.mxu0 %v776
      %800 = vmatpush1.msra.mxu0 %v775
      %801 = vmatprep.subr.mxu0 %v778
      %802 = vmatpush1.msra.mxu0 %v777
      %803 = vmatprep.subr.mxu0 %v780
      %804 = vmatpush1.msra.mxu0 %v779
      %805 = vmatprep.subr.mxu0 %v795
      %806 = vmatpush1.msra.mxu0 %v792
      %807 = vmatprep.subr.mxu0 0.0
      %808 = vmatpush1.msra.mxu0 0.0
      %809 = vmatprep.subr.mxu0 0.0
      %810 = vmatpush1.msra.mxu0 0.0
      %811 = vmatprep.subr.mxu0 0.0
      %812 = vmatpush1.msra.mxu0 0.0
      %813 = vmatprep.subr.mxu0 0.0
      %814 = vmatpush1.msra.mxu0 0.0
      %815 = vmatprep.subr.mxu0 0.0
      %816 = vmatpush1.msra.mxu0 0.0
      %817 = vmatprep.subr.mxu0 0.0
      %818 = vmatpush1.msra.mxu0 0.0
      %819 = vmatprep.subr.mxu0 0.0
      %820 = vmatpush1.msra.mxu0 0.0
      %821 = vmatprep.subr.mxu0 0.0
      %822 = vmatpush1.msra.mxu0 0.0
      %823 = vmatprep.subr.mxu0 0.0
      %824 = vmatpush1.msra.mxu0 0.0
      %825 = vmatprep.subr.mxu0 0.0
      %826 = vmatpush1.msra.mxu0 0.0
      %827 = vmatprep.subr.mxu0 0.0
      %828 = vmatpush1.msra.mxu0 0.0
      %829 = vmatprep.subr.mxu0 0.0
      %830 = vmatpush1.msra.mxu0 0.0
      %831 = vmatprep.subr.mxu0 0.0
      %832 = vmatpush1.msra.mxu0 0.0
      %833 = vmatprep.subr.mxu0 0.0
      %834 = vmatpush1.msra.mxu0 0.0
      %835 = vmatprep.subr.mxu0 0.0
      %836 = vmatpush1.msra.mxu0 0.0
      %837 = vmatprep.subr.mxu0 0.0
      %838 = vmatpush1.msra.mxu0 0.0
      %839 = vmatprep.subr.mxu0 0.0
      %840 = vmatpush1.msra.mxu0 0.0
      %841 = vmatprep.subr.mxu0 0.0
      %842 = vmatpush1.msra.mxu0 0.0
      %843 = vmatprep.subr.mxu0 0.0
      %844 = vmatpush1.msra.mxu0 0.0
      %845 = vmatprep.subr.mxu0 0.0
      %846 = vmatpush1.msra.mxu0 0.0
      %847 = vmatprep.subr.mxu0 0.0
      %848 = vmatpush1.msra.mxu0 0.0
      %849 = vmatprep.subr.mxu0 0.0
      %850 = vmatpush1.msra.mxu0 0.0
      %851 = vmatprep.subr.mxu0 0.0
      %852 = vmatpush1.msra.mxu0 0.0
      %853 = vmatprep.subr.mxu0 0.0
      %854 = vmatpush1.msra.mxu0 0.0
      %855 = vmatprep.subr.mxu0 0.0
      %856 = vmatpush1.msra.mxu0 0.0
      %857 = vmatprep.subr.mxu0 0.0
      %858 = vmatpush1.msra.mxu0 0.0
      %859 = vmatprep.subr.mxu0 0.0
      %860 = vmatpush1.msra.mxu0 0.0
      %861 = vmatprep.mubr.f32.mxu0 0.0
      %862 = vmatmul.mubr.f32.gmra.mrb[0].mxu0 %v789
      %v863 = vpop.f32.mrb[0].mxu0
      %v864 = vadd.f32 %v786, %v863
      %v865 = vpop.f32.mrb[0].mxu0
      %v866 = vadd.f32 %v786, %v865
      %867 = vdwg.mxu0
      %v868 = vmax.f32 %v864, 0.0
      %v869 = vmax.f32 %v866, 0.0
      %870 = vst [vmem:[%s278] sm:$0xff] %v868
      %871 = vst [vmem:[%s278 + $0x8] sm:$0xff] %v869
      %p872 = scmp.lt.s32.totalorder %s18, 1
      %s873 = scalar_select %p872, %s18, 1
      %s874 = smul.addr %s873, 2
      %s875 = smul.addr %s874, 8
      %s876 = scalar_lea.vmem %s7, %s875
      // Predicated region
      $region49: #{block_forward.1} parent=47 // pred_check
        %p877 = pneg %p188
      $region50: #{block_forward.1} parent=47 // pred_check_branch
        %879 = sbr.rel (%p877) target = $region52
      $region51: #{block_forward.1} parent=47 // pred_region
        _
      $region52: #{block_forward.1} parent=47 // pred_fallthru
        _
    $region48: #{block_forward.1} parent=5 // pred_fallthru
      _
    %p880 = scmp.le.s32.totalorder 2, %s13
    // Predicated region
    $region53: #{block_forward.1} parent=5 // pred_check
      %p881 = pneg %p880
    $region54: #{block_forward.1} parent=5 // pred_check_branch
      %883 = sbr.rel (%p881) target = $region56
    $region55: #{block_forward.1} parent=5 // pred_region
      %s884 = ssub.s32 %s13, 2
      // Predicated region
      $region57: #{block_forward.1} parent=55 // pred_check
        %p885 = pneg %p194
      $region58: #{block_forward.1} parent=55 // pred_check_branch
        %887 = sbr.rel (%p885) target = $region60
      $region59: #{block_forward.1} parent=55 // pred_region
        %p888 = scmp.lt.s32.totalorder %s19, 1
        %s889 = scalar_select %p888, %s19, 1
        %s890 = smul.addr %s889, 2
        %s891 = smul.addr %s890, 8
        %s892 = scalar_lea.vmem %s7, %s891
      $region60: #{block_forward.1} parent=55 // pred_fallthru
        _
    $region56: #{block_forward.1} parent=5 // pred_fallthru
      _
  $region6: #{block_forward.1} parent=0 // loop_footer
    %s17 = sadd.s32 1, %s13
  $region7: #{block_forward.1} parent=0 // loop_footer_branch
    %12 = sbr.rel target = $region3
  $region8: #{block_forward.1} parent=0 // loop_exit
    _

</llo_original>
